<compile_context>
chip_gen: v7x
topology: tpu7x:2x2x1
jax: 0.10.0
libtpu: 0.0.40
codegen_flags: <defaults>
</compile_context>

<pallas_src>
import functools

import jax
import jax.numpy as jnp
import numpy as np
from jax import lax
from jax.experimental import pallas as pl
from jax.experimental.pallas import tpu as pltpu


def _round_up(x: int, m: int) -> int:
    return ((x + m - 1) // m) * m


def _gcm_kernel(src_ref, dst_ref, out_ref):
    # src_ref: (TM, C_pad)   dst_ref: (C_pad, TN)   out_ref: (TM, TN)
    src = src_ref[...]
    dst = dst_ref[...]

    src_f32 = src.astype(jnp.float32)
    dst_f32 = dst.astype(jnp.float32)

    # L2 norm along the channel axis, computed in f32.  rsqrt goes to the EUP
    # (separate VLIW slot); the divide becomes a plain VPU multiply.
    src_ss = jnp.sum(src_f32 * src_f32, axis=1, keepdims=True)   # (TM, 1)
    dst_ss = jnp.sum(dst_f32 * dst_f32, axis=0, keepdims=True)   # (1, TN)
    # Tiny clamp: exact for any real feature vector, avoids NaN/Inf for the
    # all-zero (padding) positions.
    src_inv = lax.rsqrt(jnp.maximum(src_ss, 1e-30))
    dst_inv = lax.rsqrt(jnp.maximum(dst_ss, 1e-30))

    # Keep the MXU operands in the input dtype (bf16 inputs stay bf16 -> 2x MXU
    # throughput); accumulate in f32.
    src_n = (src_f32 * src_inv).astype(src.dtype)
    dst_n = (dst_f32 * dst_inv).astype(dst.dtype)

    # (TM, C_pad) @ (C_pad, TN) — standard MXU layout, no in-kernel transpose.
    sim = lax.dot_general(
        src_n, dst_n,
        dimension_numbers=(((1,), (0,)), ((), ())),
        preferred_element_type=jnp.float32,
    )
    # torch.max(gcm_element, zero) == ReLU
    out_ref[...] = jnp.maximum(sim, 0.0).astype(out_ref.dtype)


@functools.partial(jax.jit, static_argnames=("tm", "tn", "out_dtype"))
def geometric_correlation_map(src_map, dst_map, *, tm=256, tn=1024,
                              out_dtype=jnp.float32):
    """src_map: (B, C, Hs, Ws), dst_map: (B, C, Hd, Wd) -> (B, Hs*Ws, Hd, Wd)."""
    B, C, Hs, Ws = src_map.shape
    Bd, Cd, Hd, Wd = dst_map.shape
    assert B == Bd and C == Cd
    Ns, Nd = Hs * Ws, Hd * Wd

    in_dtype = jnp.result_type(src_map.dtype, dst_map.dtype)
    itemsize = jnp.dtype(in_dtype).itemsize
    sublane = 16 if itemsize == 2 else 8
    C_pad = _round_up(C, sublane)

    # Tile sizes: lane-dense output (TN multiple of 128), TM multiple of 8,
    # clamped so tiny problems use a single tile.  Double-buffered VMEM use is
    # ~2*(TM*TN*4 + C_pad*(TM+TN)*itemsize) ≈ 2.1 MiB at (256, 1024) — fits every
    # generation (incl. v7x's 64 MiB physical VMEM) with deep pipelining.
    TM = min(tm, _round_up(Ns, 8))
    TN = min(tn, _round_up(Nd, 128))
    Ns_pad = _round_up(Ns, TM)
    Nd_pad = _round_up(Nd, TN)

    # Layout plumbing (wrapper side): flatten spatial dims, zero-pad C and the
    # spatial extents, and transpose src so the kernel LHS tile is (TM, C_pad).
    src_flat = src_map.reshape(B, C, Ns).astype(in_dtype)
    dst_flat = dst_map.reshape(B, C, Nd).astype(in_dtype)
    src_t = jnp.transpose(src_flat, (0, 2, 1))                       # (B, Ns, C)
    src_t = jnp.pad(src_t, ((0, 0), (0, Ns_pad - Ns), (0, C_pad - C)))
    dst_p = jnp.pad(dst_flat, ((0, 0), (0, C_pad - C), (0, Nd_pad - Nd)))

    grid = (B, Ns_pad // TM, Nd_pad // TN)
    n_steps = B * (Ns_pad // TM) * (Nd_pad // TN)

    cost = pl.CostEstimate(
        flops=2 * B * C_pad * Ns_pad * Nd_pad,
        transcendentals=n_steps * (TM + TN),
        bytes_accessed=(src_t.size + dst_p.size) * itemsize
                       + B * Ns_pad * Nd_pad * jnp.dtype(out_dtype).itemsize,
    )

    out = pl.pallas_call(
        _gcm_kernel,
        out_shape=jax.ShapeDtypeStruct((B, Ns_pad, Nd_pad), out_dtype),
        grid_spec=pltpu.PrefetchScalarGridSpec(
            num_scalar_prefetch=0,
            grid=grid,
            in_specs=[
                # src tile: constant across the innermost j axis -> DMA'd once
                # per row of output tiles.
                pl.BlockSpec((None, TM, C_pad), lambda b, i, j: (b, i, 0)),
                pl.BlockSpec((None, C_pad, TN), lambda b, i, j: (b, 0, j)),
            ],
            out_specs=pl.BlockSpec((None, TM, TN), lambda b, i, j: (b, i, j)),
        ),
        compiler_params=pltpu.CompilerParams(
            # Every grid step writes a distinct output tile -> all axes are
            # independent; lets megacore chips shard the tile space too.
            dimension_semantics=("parallel", "parallel", "parallel"),
            vmem_limit_bytes=32 * 1024 * 1024,
        ),
        cost_estimate=cost,
    )(src_t, dst_p)

    # Drop padding, reshape to (B, Hs*Ws, Hd, Wd) to match torch's concat(dim=1).
    return out[:, :Ns, :Nd].reshape(B, Ns, Hd, Wd)


def _reference(src_map, dst_map):
    B, C, Hs, Ws = src_map.shape
    _, _, Hd, Wd = dst_map.shape
    s = src_map.reshape(B, C, Hs * Ws)
    d = dst_map.reshape(B, C, Hd * Wd)
    s = s / jnp.linalg.norm(s, axis=1, keepdims=True)
    d = d / jnp.linalg.norm(d, axis=1, keepdims=True)
    sim = jnp.einsum("bci,bcj->bij", s, d)
    return jnp.maximum(sim, 0.0).reshape(B, Hs * Ws, Hd, Wd)


def _run_case(key, B, C, Hs, Ws, Hd, Wd):
    k1, k2 = jax.random.split(key)
    src_map = jax.random.normal(k1, (B, C, Hs, Ws), dtype=jnp.float32)
    dst_map = jax.random.normal(k2, (B, C, Hd, Wd), dtype=jnp.float32)

    gcm = jax.block_until_ready(geometric_correlation_map(src_map, dst_map))
    ref = jax.block_until_ready(_reference(src_map, dst_map))

    assert gcm.shape == (B, Hs * Ws, Hd, Wd)
    np.testing.assert_allclose(np.asarray(gcm), np.asarray(ref),
                               atol=1e-5, rtol=1e-5)


if __name__ == "__main__":
    key = jax.random.PRNGKey(0)
    ka, kb = jax.random.split(key)

    # Aligned shapes (C padded 4->8).
    _run_case(ka, B=2, C=4, Hs=8, Ws=8, Hd=16, Wd=16)
    # Unaligned spatial dims: exercises spatial padding + output slicing.
    _run_case(kb, B=2, C=4, Hs=5, Ws=5, Hd=10, Wd=10)

    print("KERNEL_OK")
</pallas_src>

<mosaic_0001>
module attributes {stable_mosaic.version = 11 : i64} {
  func.func @_gcm_kernel(%arg0: i32, %arg1: i32, %arg2: i32, %arg3: memref<1x64x8xf32, #tpu.memory_space<vmem>>, %arg4: memref<1x8x256xf32, #tpu.memory_space<vmem>>, %arg5: memref<1x64x256xf32, #tpu.memory_space<vmem>>) attributes {dimension_semantics = [#tpu.dimension_semantics<parallel>, #tpu.dimension_semantics<parallel>, #tpu.dimension_semantics<parallel>], iteration_bounds = array<i64: 2, 1, 1>, scalar_prefetch = 0 : i64, scratch_operands = 0 : i64, tpu.core_type = #tpu.core_type<tc>, window_params = [{transform_indices = @transform_0, window_bounds = array<i64: 1, 64, 8>}, {transform_indices = @transform_1, window_bounds = array<i64: 1, 8, 256>}, {transform_indices = @transform_2, window_bounds = array<i64: 1, 64, 256>}]} {
    %c0 = arith.constant 0 : index
    %c0_0 = arith.constant 0 : index
    %c0_1 = arith.constant 0 : index
    %0 = vector.load %arg3[%c0, %c0_0, %c0_1] : memref<1x64x8xf32, #tpu.memory_space<vmem>>, vector<1x64x8xf32>
    %1 = vector.shape_cast %0 : vector<1x64x8xf32> to vector<64x8xf32>
    %c0_2 = arith.constant 0 : index
    %c0_3 = arith.constant 0 : index
    %c0_4 = arith.constant 0 : index
    %2 = vector.load %arg4[%c0_2, %c0_3, %c0_4] : memref<1x8x256xf32, #tpu.memory_space<vmem>>, vector<1x8x256xf32>
    %3 = vector.shape_cast %2 : vector<1x8x256xf32> to vector<8x256xf32>
    %4 = arith.mulf %1, %1 : vector<64x8xf32>
    %cst = arith.constant dense<0.000000e+00> : vector<64xf32>
    %5 = vector.multi_reduction <add>, %4, %cst [1] : vector<64x8xf32> to vector<64xf32>
    %6 = vector.shape_cast %5 : vector<64xf32> to vector<64x1xf32>
    %7 = arith.mulf %3, %3 : vector<8x256xf32>
    %cst_5 = arith.constant dense<0.000000e+00> : vector<256xf32>
    %8 = vector.multi_reduction <add>, %7, %cst_5 [0] : vector<8x256xf32> to vector<256xf32>
    %9 = vector.shape_cast %8 : vector<256xf32> to vector<1x256xf32>
    %cst_6 = arith.constant 1.000000e-30 : f32
    %10 = vector.broadcast %cst_6 : f32 to vector<64x1xf32>
    %11 = arith.maximumf %6, %10 : vector<64x1xf32>
    %12 = math.rsqrt %11 : vector<64x1xf32>
    %cst_7 = arith.constant 1.000000e-30 : f32
    %13 = vector.broadcast %cst_7 : f32 to vector<1x256xf32>
    %14 = arith.maximumf %9, %13 : vector<1x256xf32>
    %15 = math.rsqrt %14 : vector<1x256xf32>
    %16 = vector.broadcast %12 : vector<64x1xf32> to vector<64x8xf32>
    %17 = arith.mulf %1, %16 : vector<64x8xf32>
    %18 = vector.broadcast %15 : vector<1x256xf32> to vector<8x256xf32>
    %19 = arith.mulf %3, %18 : vector<8x256xf32>
    %cst_8 = arith.constant dense<0.000000e+00> : vector<64x256xf32>
    %20 = tpu.matmul %17, %19, %cst_8 {dimension_numbers = #tpu.dot_dimension_numbers<[1], [0], [0], [1], [0, 0, 1, 1], [], []>} : vector<64x8xf32>, vector<8x256xf32>, vector<64x256xf32> -> vector<64x256xf32>
    %cst_9 = arith.constant 0.000000e+00 : f32
    %21 = vector.broadcast %cst_9 : f32 to vector<64x256xf32>
    %22 = arith.maximumf %20, %21 : vector<64x256xf32>
    %c0_10 = arith.constant 0 : index
    %c0_11 = arith.constant 0 : index
    %c0_12 = arith.constant 0 : index
    %23 = vector.load %arg5[%c0_10, %c0_11, %c0_12] : memref<1x64x256xf32, #tpu.memory_space<vmem>>, vector<1x64x256xf32>
    %24 = vector.shape_cast %23 : vector<1x64x256xf32> to vector<64x256xf32>
    %25 = vector.shape_cast %22 : vector<64x256xf32> to vector<1x64x256xf32>
    tpu.vector_store %arg5[%c0_10, %c0_11, %c0_12], %25 {strides = array<i32>} : memref<1x64x256xf32, #tpu.memory_space<vmem>>, vector<1x64x256xf32>,
    return
  }
  func.func @transform_0(%arg0: i32, %arg1: i32, %arg2: i32) -> (i32, i32, i32) {
    %c0_i32 = arith.constant 0 : i32
    %c0_i32_0 = arith.constant 0 : i32
    return %arg0, %arg1, %c0_i32 : i32, i32, i32
  }
  func.func @transform_1(%arg0: i32, %arg1: i32, %arg2: i32) -> (i32, i32, i32) {
    %c0_i32 = arith.constant 0 : i32
    %c0_i32_0 = arith.constant 0 : i32
    return %arg0, %c0_i32, %arg2 : i32, i32, i32
  }
  func.func @transform_2(%arg0: i32, %arg1: i32, %arg2: i32) -> (i32, i32, i32) {
    %c0_i32 = arith.constant 0 : i32
    return %arg0, %arg1, %arg2 : i32, i32, i32
  }
}

</mosaic_0001>

<llo_original>
// kernel: geometric_correlation_map.1
$region0: #{geometric_correlation_map.1}
  #allocation0 [shape = 'u32[]', space=smem, size = 0x4, offset = 0x4, fixed_abs, tag = 'smem constant byte address 0x4 - core index']
  #allocation1 [shape = 'u32[144,128]{1,0:T(1,128)}', space=vmem, size = 0x12000, scoped, tag = 'internal scratch']
  %s0 = inlined_call_operand.vmem [shape: f32[2,64,8], index: 0, kind: input, shape index: {}]
  %s1 = inlined_call_operand.vmem [shape: f32[2,8,256], index: 1, kind: input, shape index: {}]
  %s2 = inlined_call_operand.vmem [shape: f32[2,64,256], index: 2, kind: output, shape index: {}]
  %s3 = sld [smem:[#allocation0]]
  $region41: #{geometric_correlation_map.1} parent=0
    _
  %s5 = ssub.s32 1, %s3
  %s6 = scalar_select 0, %s5, %s3
  loop: start=0, step=1, limit=4
  $region2: #{geometric_correlation_map.1} parent=0 // loop_pre_header
    _
  $region3: #{geometric_correlation_map.1} parent=0 // loop_header
    %s8 = sphi 0, %s12
    %p9 = scmp.ge.s32.totalorder %s8, 4
    %s15 = sphi 0, %s34
    %s16 = sphi 0, %s30
    %s17 = sphi 0, %s26
    %s18 = sphi 0, %s15
    %s19 = sphi 0, %s16
    %s20 = sphi 0, %s17
    %s21 = sphi 0, %s18
    %s22 = sphi 0, %s19
    %s23 = sphi 0, %s20
    %s39 = sphi 0, %s41
    %s42 = sphi 0, %s39
    %s43 = sphi 0, %s42
    %s59 = sphi 0, %s43
    %s67 = sphi 0, %s69
    %s70 = sphi 0, %s67
    %s71 = sphi 0, %s70
    %s87 = sphi 0, %s71
    %s97 = sphi 0, %s99
    %s100 = sphi 0, %s97
    %s101 = sphi 0, %s100
    %s117 = sphi 0, %s101
  $region4: #{geometric_correlation_map.1} parent=0 // loop_header_branch
    %11 = sbr.rel (%p9) target = $region8
  $region5: #{geometric_correlation_map.1} parent=0 // loop_body
    %s13 = ssub.s32 %s8, 1
    %s14 = ssub.s32 %s8, 2
    %s24 = sadd.s32 1, %s17
    %p25 = scmp.ge.s32.totalorder %s24, 1
    %s26 = scalar_select %p25, 0, %s24
    %s27 = sadd.s32 1, %s16
    %s28 = scalar_select %p25, %s27, %s16
    %p29 = scmp.ge.s32.totalorder %s28, 1
    %s30 = scalar_select %p29, 0, %s28
    %s31 = sadd.s32 1, %s15
    %s32 = scalar_select %p29, %s31, %s15
    %p33 = scmp.ge.s32.totalorder %s32, 2
    %s34 = scalar_select %p33, 0, %s32
    %s35 = ssub.s32 %s15, %s34
    %s36 = ssub.s32 %s16, %s30
    %s37 = sor.u32 %s35, %s36
    %p38 = scmp.eq.s32.totalorder %s37, 0
    %s40 = sadd.s32 %s39, 1
    %s41 = scalar_select %p38, %s39, %s40
    %p44 = pneg %p38
    %p45 = scmp.eq.s32.totalorder %s8, 1
    %p46 = por %p44, %p45
    %p47 = scmp.ne.s32.totalorder %s39, %s42
    %p48 = scmp.eq.s32.totalorder %s8, 0
    %p49 = por %p47, %p48
    %p50 = scmp.ne.s32.totalorder %s39, %s42
    %p51 = scmp.eq.s32.totalorder %s13, 1
    %p52 = por %p50, %p51
    %p53 = scmp.ne.s32.totalorder %s42, %s43
    %p54 = scmp.eq.s32.totalorder %s13, 0
    %p55 = por %p53, %p54
    %p56 = scmp.ne.s32.totalorder %s42, %s43
    %p57 = scmp.eq.s32.totalorder %s14, 1
    %p58 = por %p56, %p57
    %p60 = scmp.ne.s32.totalorder %s43, %s59
    %p61 = scmp.eq.s32.totalorder %s14, 0
    %p62 = por %p60, %p61
    %s63 = ssub.s32 %s15, %s34
    %s64 = ssub.s32 %s17, %s26
    %s65 = sor.u32 %s63, %s64
    %p66 = scmp.eq.s32.totalorder %s65, 0
    %s68 = sadd.s32 %s67, 1
    %s69 = scalar_select %p66, %s67, %s68
    %p72 = pneg %p66
    %p73 = scmp.eq.s32.totalorder %s8, 1
    %p74 = por %p72, %p73
    %p75 = scmp.ne.s32.totalorder %s67, %s70
    %p76 = scmp.eq.s32.totalorder %s8, 0
    %p77 = por %p75, %p76
    %p78 = scmp.ne.s32.totalorder %s67, %s70
    %p79 = scmp.eq.s32.totalorder %s13, 1
    %p80 = por %p78, %p79
    %p81 = scmp.ne.s32.totalorder %s70, %s71
    %p82 = scmp.eq.s32.totalorder %s13, 0
    %p83 = por %p81, %p82
    %p84 = scmp.ne.s32.totalorder %s70, %s71
    %p85 = scmp.eq.s32.totalorder %s14, 1
    %p86 = por %p84, %p85
    %p88 = scmp.ne.s32.totalorder %s71, %s87
    %p89 = scmp.eq.s32.totalorder %s14, 0
    %p90 = por %p88, %p89
    %s91 = ssub.s32 %s15, %s34
    %s92 = ssub.s32 %s16, %s30
    %s93 = sor.u32 %s91, %s92
    %s94 = ssub.s32 %s17, %s26
    %s95 = sor.u32 %s93, %s94
    %p96 = scmp.eq.s32.totalorder %s95, 0
    %s98 = sadd.s32 %s97, 1
    %s99 = scalar_select %p96, %s97, %s98
    %p102 = pneg %p96
    %p103 = scmp.eq.s32.totalorder %s8, 1
    %p104 = por %p102, %p103
    %p105 = scmp.ne.s32.totalorder %s97, %s100
    %p106 = scmp.eq.s32.totalorder %s8, 0
    %p107 = por %p105, %p106
    %p108 = scmp.ne.s32.totalorder %s97, %s100
    %p109 = scmp.eq.s32.totalorder %s13, 1
    %p110 = por %p108, %p109
    %p111 = scmp.ne.s32.totalorder %s100, %s101
    %p112 = scmp.eq.s32.totalorder %s13, 0
    %p113 = por %p111, %p112
    %p114 = scmp.ne.s32.totalorder %s100, %s101
    %p115 = scmp.eq.s32.totalorder %s14, 1
    %p116 = por %p114, %p115
    %p118 = scmp.ne.s32.totalorder %s101, %s117
    %p119 = scmp.eq.s32.totalorder %s14, 0
    %p120 = por %p118, %p119
    %p121 = scmp.le.s32.totalorder 1, %s8
    %p122 = scmp.lt.s32.totalorder %s8, 3
    %p123 = pnand %p121, %p122
    %p124 = pneg %p123
    // Predicated region
    $region9: #{geometric_correlation_map.1} parent=5 // pred_check
      _
    $region10: #{geometric_correlation_map.1} parent=5 // pred_check_branch
      %126 = sbr.rel (%p123) target = $region12
    $region11: #{geometric_correlation_map.1} parent=5 // pred_region
      %s127 = ssub.s32 %s8, 1
    $region12: #{geometric_correlation_map.1} parent=5 // pred_fallthru
      _
    %p128 = scmp.lt.s32.totalorder %s8, 2
    // Predicated region
    $region13: #{geometric_correlation_map.1} parent=5 // pred_check
      %p129 = pneg %p128
    $region14: #{geometric_correlation_map.1} parent=5 // pred_check_branch
      %131 = sbr.rel (%p129) target = $region16
    $region15: #{geometric_correlation_map.1} parent=5 // pred_region
      // Predicated region
      $region17: #{geometric_correlation_map.1} parent=15 // pred_check
        %p132 = pneg %p49
      $region18: #{geometric_correlation_map.1} parent=15 // pred_check_branch
        %134 = sbr.rel (%p132) target = $region20
      $region19: #{geometric_correlation_map.1} parent=15 // pred_region
        %s135 = smul.u32 8, %s16
        %p136 = scmp.lt.s32.totalorder %s15, 1
        %s137 = scalar_select %p136, %s15, 1
        %p138 = scmp.lt.s32.totalorder %s135, 7
        %s139 = scalar_select %p138, %s135, 7
        %s140 = smul.addr %s137, 8
        %s141 = sadd.s32 %s139, %s140
        %s142 = smul.addr %s141, 8
        %s143 = scalar_lea.vmem %s0, %s142
        %s144 = smul.u32 8, %s16
      $region20: #{geometric_correlation_map.1} parent=15 // pred_fallthru
        _
      // Predicated region
      $region21: #{geometric_correlation_map.1} parent=15 // pred_check
        %p145 = pneg %p77
      $region22: #{geometric_correlation_map.1} parent=15 // pred_check_branch
        %147 = sbr.rel (%p145) target = $region24
      $region23: #{geometric_correlation_map.1} parent=15 // pred_region
        %s148 = smul.u32 2, %s17
        %p149 = scmp.lt.s32.totalorder %s15, 1
        %s150 = scalar_select %p149, %s15, 1
        %p151 = scmp.lt.s32.totalorder %s148, 1
        %s152 = scalar_select %p151, %s148, 1
        %s153 = smul.addr %s150, 2
        %s154 = sadd.s32 %s152, %s153
        %s155 = smul.addr %s154, 8
        %s156 = scalar_lea.vmem %s1, %s155
        %s157 = smul.u32 2, %s17
      $region24: #{geometric_correlation_map.1} parent=15 // pred_fallthru
        _
    $region16: #{geometric_correlation_map.1} parent=5 // pred_fallthru
      _
    %p158 = scmp.le.s32.totalorder 1, %s8
    %p159 = scmp.lt.s32.totalorder %s8, 3
    %p160 = pnand %p158, %p159
    %p161 = pneg %p160
    // Predicated region
    $region25: #{geometric_correlation_map.1} parent=5 // pred_check
      _
    $region26: #{geometric_correlation_map.1} parent=5 // pred_check_branch
      %163 = sbr.rel (%p160) target = $region28
    $region27: #{geometric_correlation_map.1} parent=5 // pred_region
      %s164 = ssub.s32 %s8, 1
      %s165 = smul.u32 8, %s19
      %p166 = scmp.lt.s32.totalorder %s18, 1
      %s167 = scalar_select %p166, %s18, 1
      %p168 = scmp.lt.s32.totalorder %s165, 7
      %s169 = scalar_select %p168, %s165, 7
      %s170 = smul.addr %s167, 8
      %s171 = sadd.s32 %s169, %s170
      %s172 = smul.addr %s171, 8
      %s173 = scalar_lea.vmem %s0, %s172
      %p174 = pneg %p55
      %p175 = pneg %p52
      %s176 = smul.u32 2, %s20
      %p177 = scmp.lt.s32.totalorder %s18, 1
      %s178 = scalar_select %p177, %s18, 1
      %p179 = scmp.lt.s32.totalorder %s176, 1
      %s180 = scalar_select %p179, %s176, 1
      %s181 = smul.addr %s178, 2
      %s182 = sadd.s32 %s180, %s181
      %s183 = smul.addr %s182, 8
      %s184 = scalar_lea.vmem %s1, %s183
      %p185 = pneg %p83
      %p186 = pneg %p80
      %p187 = pneg %p113
      %p188 = pneg %p110
      %s189 = smul.u32 8, %s19
      %s190 = smul.u32 2, %s20
      %p191 = scmp.lt.s32.totalorder %s18, 1
      %s192 = scalar_select %p191, %s18, 1
      %p193 = scmp.lt.s32.totalorder %s189, 7
      %s194 = scalar_select %p193, %s189, 7
      %p195 = scmp.lt.s32.totalorder %s190, 1
      %s196 = scalar_select %p195, %s190, 1
      %s197 = smul.addr %s194, 2
      %s198 = sadd.s32 %s196, %s197
      %s199 = smul.addr %s192, 16
      %s200 = sadd.s32 %s198, %s199
      %s201 = smul.addr %s200, 8
      %s202 = scalar_lea.vmem %s2, %s201
      %s203 = smul.u32 8, %s19
      %p204 = scmp.lt.s32.totalorder %s18, 1
      %s205 = scalar_select %p204, %s18, 1
      %p206 = scmp.lt.s32.totalorder %s203, 7
      %s207 = scalar_select %p206, %s203, 7
      %s208 = smul.addr %s205, 8
      %s209 = sadd.s32 %s207, %s208
      %s210 = smul.addr %s209, 8
      %s211 = scalar_lea.vmem %s0, %s210
      %s212 = smul.u32 8, %s19
      %s213 = smul.u32 2, %s20
      %p214 = scmp.lt.s32.totalorder %s18, 1
      %s215 = scalar_select %p214, %s18, 1
      %p216 = scmp.lt.s32.totalorder %s213, 1
      %s217 = scalar_select %p216, %s213, 1
      %s218 = smul.addr %s215, 2
      %s219 = sadd.s32 %s217, %s218
      %s220 = smul.addr %s219, 8
      %s221 = scalar_lea.vmem %s1, %s220
      %s222 = smul.u32 2, %s20
      %s223 = smul.u32 8, %s19
      %s224 = smul.u32 2, %s20
      %p225 = scmp.lt.s32.totalorder %s18, 1
      %s226 = scalar_select %p225, %s18, 1
      %p227 = scmp.lt.s32.totalorder %s223, 7
      %s228 = scalar_select %p227, %s223, 7
      %p229 = scmp.lt.s32.totalorder %s224, 1
      %s230 = scalar_select %p229, %s224, 1
      %s231 = smul.addr %s228, 2
      %s232 = sadd.s32 %s230, %s231
      %s233 = smul.addr %s226, 16
      %s234 = sadd.s32 %s232, %s233
      %s235 = smul.addr %s234, 8
      %s236 = scalar_lea.vmem %s2, %s235
      %s237 = smul.u32 8, %s19
      %s238 = smul.u32 2, %s20
      %v239 = vld [vmem:[%s211] sm:$0xff]
      %v240 = vld [vmem:[%s211 + $0x8] sm:$0xff]
      %v241 = vld [vmem:[%s211 + $0x10] sm:$0xff]
      %v242 = vld [vmem:[%s211 + $0x18] sm:$0xff]
      %v243 = vld [vmem:[%s211 + $0x20] sm:$0xff]
      %v244 = vld [vmem:[%s211 + $0x28] sm:$0xff]
      %v245 = vld [vmem:[%s211 + $0x30] sm:$0xff]
      %v246 = vld [vmem:[%s211 + $0x38] sm:$0xff]
      %v247 = vld [vmem:[%s221] sm:$0xff]
      %v248 = vld [vmem:[%s221 + $0x8] sm:$0xff]
      %v249 = vmul.f32 %v239, %v239
      %v250 = vmul.f32 %v240, %v240
      %v251 = vmul.f32 %v241, %v241
      %v252 = vmul.f32 %v242, %v242
      %v253 = vmul.f32 %v243, %v243
      %v254 = vmul.f32 %v244, %v244
      %v255 = vmul.f32 %v245, %v245
      %v256 = vmul.f32 %v246, %v246
      %vm257 = vcmask 64512
      %v258 = vsel %vm257, %v249, 0.0
      %259 = vadd.xlane.f32.xlu0 %v258
      %v260 = vpop.xlane.xlu0 %259
      %v261 = vsel %vm257, %v250, 0.0
      %262 = vadd.xlane.f32.xlu0 %v261
      %v263 = vpop.xlane.xlu0 %262
      %v264 = vsel %vm257, %v251, 0.0
      %265 = vadd.xlane.f32.xlu0 %v264
      %v266 = vpop.xlane.xlu0 %265
      %v267 = vsel %vm257, %v252, 0.0
      %268 = vadd.xlane.f32.xlu0 %v267
      %v269 = vpop.xlane.xlu0 %268
      %v270 = vsel %vm257, %v253, 0.0
      %271 = vadd.xlane.f32.xlu0 %v270
      %v272 = vpop.xlane.xlu0 %271
      %v273 = vsel %vm257, %v254, 0.0
      %274 = vadd.xlane.f32.xlu0 %v273
      %v275 = vpop.xlane.xlu0 %274
      %v276 = vsel %vm257, %v255, 0.0
      %277 = vadd.xlane.f32.xlu0 %v276
      %v278 = vpop.xlane.xlu0 %277
      %v279 = vsel %vm257, %v256, 0.0
      %280 = vadd.xlane.f32.xlu0 %v279
      %v281 = vpop.xlane.xlu0 %280
      %v282 = vmul.f32 %v247, %v247
      %v283 = vmul.f32 %v248, %v248
      %v284 = vrot.slane %v282, 4
      %v285 = vadd.f32 %v282, %v284
      %v286 = vrot.slane %v285, 2
      %v287 = vadd.f32 %v285, %v286
      %v288 = vrot.slane %v287, 1
      %v289 = vadd.f32 %v287, %v288
      %v290 = vrot.slane %v283, 4
      %v291 = vadd.f32 %v283, %v290
      %v292 = vrot.slane %v291, 2
      %v293 = vadd.f32 %v291, %v292
      %v294 = vrot.slane %v293, 1
      %v295 = vadd.f32 %v293, %v294
      %v296 = vmax.f32 %v260, 1e-30
      %v297 = vmax.f32 %v263, 1e-30
      %v298 = vmax.f32 %v266, 1e-30
      %v299 = vmax.f32 %v269, 1e-30
      %v300 = vmax.f32 %v272, 1e-30
      %v301 = vmax.f32 %v275, 1e-30
      %v302 = vmax.f32 %v278, 1e-30
      %v303 = vmax.f32 %v281, 1e-30
      %v304 = vrsqrt.pop %v296
      %v305 = vrsqrt.pop %v297
      %v306 = vrsqrt.pop %v298
      %v307 = vrsqrt.pop %v299
      %v308 = vrsqrt.pop %v300
      %v309 = vrsqrt.pop %v301
      %v310 = vrsqrt.pop %v302
      %v311 = vrsqrt.pop %v303
      %v312 = vmax.f32 %v289, 1e-30
      %v313 = vmax.f32 %v295, 1e-30
      %v314 = vrsqrt.pop %v312
      %v315 = vrsqrt.pop %v313
      %v316 = vmul.f32 %v239, %v304
      %v317 = vmul.f32 %v240, %v305
      %v318 = vmul.f32 %v241, %v306
      %v319 = vmul.f32 %v242, %v307
      %v320 = vmul.f32 %v243, %v308
      %v321 = vmul.f32 %v244, %v309
      %v322 = vmul.f32 %v245, %v310
      %v323 = vmul.f32 %v246, %v311
      %v324 = vmul.f32 %v247, %v314
      %v325 = vmul.f32 %v248, %v315
      %v327 = vsel %vm257, %v316, 0
      %v330 = vsel %vm257, %v317, 0
      %v333 = vsel %vm257, %v318, 0
      %v336 = vsel %vm257, %v319, 0
      %v339 = vsel %vm257, %v320, 0
      %v342 = vsel %vm257, %v321, 0
      %v345 = vsel %vm257, %v322, 0
      %v348 = vsel %vm257, %v323, 0
      %350 = vmatprep.subr.mxu0 %v325
      %351 = vmatpush1.msra.mxu0 %v324
      %352 = vmatprep.subr.mxu0 0.0
      %353 = vmatpush1.msra.mxu0 0.0
      %354 = vmatprep.subr.mxu0 0.0
      %355 = vmatpush1.msra.mxu0 0.0
      %356 = vmatprep.subr.mxu0 0.0
      %357 = vmatpush1.msra.mxu0 0.0
      %358 = vmatprep.subr.mxu0 0.0
      %359 = vmatpush1.msra.mxu0 0.0
      %360 = vmatprep.subr.mxu0 0.0
      %361 = vmatpush1.msra.mxu0 0.0
      %362 = vmatprep.subr.mxu0 0.0
      %363 = vmatpush1.msra.mxu0 0.0
      %364 = vmatprep.subr.mxu0 0.0
      %365 = vmatpush1.msra.mxu0 0.0
      %366 = vmatprep.subr.mxu0 0.0
      %367 = vmatpush1.msra.mxu0 0.0
      %368 = vmatprep.subr.mxu0 0.0
      %369 = vmatpush1.msra.mxu0 0.0
      %370 = vmatprep.subr.mxu0 0.0
      %371 = vmatpush1.msra.mxu0 0.0
      %372 = vmatprep.subr.mxu0 0.0
      %373 = vmatpush1.msra.mxu0 0.0
      %374 = vmatprep.subr.mxu0 0.0
      %375 = vmatpush1.msra.mxu0 0.0
      %376 = vmatprep.subr.mxu0 0.0
      %377 = vmatpush1.msra.mxu0 0.0
      %378 = vmatprep.subr.mxu0 0.0
      %379 = vmatpush1.msra.mxu0 0.0
      %380 = vmatprep.subr.mxu0 0.0
      %381 = vmatpush1.msra.mxu0 0.0
      %382 = vmatprep.subr.mxu0 0.0
      %383 = vmatpush1.msra.mxu0 0.0
      %384 = vmatprep.subr.mxu0 0.0
      %385 = vmatpush1.msra.mxu0 0.0
      %386 = vmatprep.subr.mxu0 0.0
      %387 = vmatpush1.msra.mxu0 0.0
      %388 = vmatprep.subr.mxu0 0.0
      %389 = vmatpush1.msra.mxu0 0.0
      %390 = vmatprep.subr.mxu0 0.0
      %391 = vmatpush1.msra.mxu0 0.0
      %392 = vmatprep.subr.mxu0 0.0
      %393 = vmatpush1.msra.mxu0 0.0
      %394 = vmatprep.subr.mxu0 0.0
      %395 = vmatpush1.msra.mxu0 0.0
      %396 = vmatprep.subr.mxu0 0.0
      %397 = vmatpush1.msra.mxu0 0.0
      %398 = vmatprep.subr.mxu0 0.0
      %399 = vmatpush1.msra.mxu0 0.0
      %400 = vmatprep.subr.mxu0 0.0
      %401 = vmatpush1.msra.mxu0 0.0
      %402 = vmatprep.subr.mxu0 0.0
      %403 = vmatpush1.msra.mxu0 0.0
      %404 = vmatprep.subr.mxu0 0.0
      %405 = vmatpush1.msra.mxu0 0.0
      %406 = vmatprep.subr.mxu0 0.0
      %407 = vmatpush1.msra.mxu0 0.0
      %408 = vmatprep.subr.mxu0 0.0
      %409 = vmatpush1.msra.mxu0 0.0
      %410 = vmatprep.subr.mxu0 0.0
      %411 = vmatpush1.msra.mxu0 0.0
      %412 = vmatprep.subr.mxu0 0.0
      %413 = vmatpush1.msra.mxu0 0.0
      %414 = vmatprep.mubr.f32.mxu0 0.0
      %415 = vmatmul.mubr.f32.gmra.mrb[0].mxu0 %v327
      %v416 = vpop.f32.mrb[0].mxu0
      %v417 = vadd.f32 0.0, %v416
      %v418 = vpop.f32.mrb[0].mxu0
      %v419 = vadd.f32 0.0, %v418
      %420 = vmatprep.mubr.f32.mxu0 0.0
      %421 = vmatmul.mubr.f32.gmra.mrb[0].mxu0 %v330
      %v422 = vpop.f32.mrb[0].mxu0
      %v423 = vadd.f32 0.0, %v422
      %v424 = vpop.f32.mrb[0].mxu0
      %v425 = vadd.f32 0.0, %v424
      %426 = vmatprep.mubr.f32.mxu0 0.0
      %427 = vmatmul.mubr.f32.gmra.mrb[0].mxu0 %v333
      %v428 = vpop.f32.mrb[0].mxu0
      %v429 = vadd.f32 0.0, %v428
      %v430 = vpop.f32.mrb[0].mxu0
      %v431 = vadd.f32 0.0, %v430
      %432 = vmatprep.mubr.f32.mxu0 0.0
      %433 = vmatmul.mubr.f32.gmra.mrb[0].mxu0 %v336
      %v434 = vpop.f32.mrb[0].mxu0
      %v435 = vadd.f32 0.0, %v434
      %v436 = vpop.f32.mrb[0].mxu0
      %v437 = vadd.f32 0.0, %v436
      %438 = vmatprep.mubr.f32.mxu0 0.0
      %439 = vmatmul.mubr.f32.gmra.mrb[0].mxu0 %v339
      %v440 = vpop.f32.mrb[0].mxu0
      %v441 = vadd.f32 0.0, %v440
      %v442 = vpop.f32.mrb[0].mxu0
      %v443 = vadd.f32 0.0, %v442
      %444 = vmatprep.mubr.f32.mxu0 0.0
      %445 = vmatmul.mubr.f32.gmra.mrb[0].mxu0 %v342
      %v446 = vpop.f32.mrb[0].mxu0
      %v447 = vadd.f32 0.0, %v446
      %v448 = vpop.f32.mrb[0].mxu0
      %v449 = vadd.f32 0.0, %v448
      %450 = vmatprep.mubr.f32.mxu0 0.0
      %451 = vmatmul.mubr.f32.gmra.mrb[0].mxu0 %v345
      %v452 = vpop.f32.mrb[0].mxu0
      %v453 = vadd.f32 0.0, %v452
      %v454 = vpop.f32.mrb[0].mxu0
      %v455 = vadd.f32 0.0, %v454
      %456 = vmatprep.mubr.f32.mxu0 0.0
      %457 = vmatmul.mubr.f32.gmra.mrb[0].mxu0 %v348
      %v458 = vpop.f32.mrb[0].mxu0
      %v459 = vadd.f32 0.0, %v458
      %v460 = vpop.f32.mrb[0].mxu0
      %v461 = vadd.f32 0.0, %v460
      %462 = vdwg.mxu0
      %v463 = vmax.f32 %v417, 0.0
      %v464 = vmax.f32 %v419, 0.0
      %v465 = vmax.f32 %v423, 0.0
      %v466 = vmax.f32 %v425, 0.0
      %v467 = vmax.f32 %v429, 0.0
      %v468 = vmax.f32 %v431, 0.0
      %v469 = vmax.f32 %v435, 0.0
      %v470 = vmax.f32 %v437, 0.0
      %v471 = vmax.f32 %v441, 0.0
      %v472 = vmax.f32 %v443, 0.0
      %v473 = vmax.f32 %v447, 0.0
      %v474 = vmax.f32 %v449, 0.0
      %v475 = vmax.f32 %v453, 0.0
      %v476 = vmax.f32 %v455, 0.0
      %v477 = vmax.f32 %v459, 0.0
      %v478 = vmax.f32 %v461, 0.0
      %479 = vst [vmem:[%s236] sm:$0xff] %v463
      %480 = vst [vmem:[%s236 + $0x8] sm:$0xff] %v464
      %481 = vst [vmem:[%s236 + $0x10] sm:$0xff] %v465
      %482 = vst [vmem:[%s236 + $0x18] sm:$0xff] %v466
      %483 = vst [vmem:[%s236 + $0x20] sm:$0xff] %v467
      %484 = vst [vmem:[%s236 + $0x28] sm:$0xff] %v468
      %485 = vst [vmem:[%s236 + $0x30] sm:$0xff] %v469
      %486 = vst [vmem:[%s236 + $0x38] sm:$0xff] %v470
      %487 = vst [vmem:[%s236 + $0x40] sm:$0xff] %v471
      %488 = vst [vmem:[%s236 + $0x48] sm:$0xff] %v472
      %489 = vst [vmem:[%s236 + $0x50] sm:$0xff] %v473
      %490 = vst [vmem:[%s236 + $0x58] sm:$0xff] %v474
      %491 = vst [vmem:[%s236 + $0x60] sm:$0xff] %v475
      %492 = vst [vmem:[%s236 + $0x68] sm:$0xff] %v476
      %493 = vst [vmem:[%s236 + $0x70] sm:$0xff] %v477
      %494 = vst [vmem:[%s236 + $0x78] sm:$0xff] %v478
      %s495 = smul.u32 8, %s19
      %s496 = smul.u32 2, %s20
      %p497 = scmp.lt.s32.totalorder %s18, 1
      %s498 = scalar_select %p497, %s18, 1
      %p499 = scmp.lt.s32.totalorder %s495, 7
      %s500 = scalar_select %p499, %s495, 7
      %p501 = scmp.lt.s32.totalorder %s496, 1
      %s502 = scalar_select %p501, %s496, 1
      %s503 = smul.addr %s500, 2
      %s504 = sadd.s32 %s502, %s503
      %s505 = smul.addr %s498, 16
      %s506 = sadd.s32 %s504, %s505
      %s507 = smul.addr %s506, 8
      %s508 = scalar_lea.vmem %s2, %s507
      // Predicated region
      $region29: #{geometric_correlation_map.1} parent=27 // pred_check
        %p509 = pneg %p110
      $region30: #{geometric_correlation_map.1} parent=27 // pred_check_branch
        %511 = sbr.rel (%p509) target = $region32
      $region31: #{geometric_correlation_map.1} parent=27 // pred_region
        %s512 = smul.u32 8, %s19
        %s513 = smul.u32 2, %s20
      $region32: #{geometric_correlation_map.1} parent=27 // pred_fallthru
        _
    $region28: #{geometric_correlation_map.1} parent=5 // pred_fallthru
      _
    %p514 = scmp.le.s32.totalorder 2, %s8
    // Predicated region
    $region33: #{geometric_correlation_map.1} parent=5 // pred_check
      %p515 = pneg %p514
    $region34: #{geometric_correlation_map.1} parent=5 // pred_check_branch
      %517 = sbr.rel (%p515) target = $region36
    $region35: #{geometric_correlation_map.1} parent=5 // pred_region
      %s518 = ssub.s32 %s8, 2
      // Predicated region
      $region37: #{geometric_correlation_map.1} parent=35 // pred_check
        %p519 = pneg %p116
      $region38: #{geometric_correlation_map.1} parent=35 // pred_check_branch
        %521 = sbr.rel (%p519) target = $region40
      $region39: #{geometric_correlation_map.1} parent=35 // pred_region
        %s522 = smul.u32 8, %s22
        %s523 = smul.u32 2, %s23
        %p524 = scmp.lt.s32.totalorder %s21, 1
        %s525 = scalar_select %p524, %s21, 1
        %p526 = scmp.lt.s32.totalorder %s522, 7
        %s527 = scalar_select %p526, %s522, 7
        %p528 = scmp.lt.s32.totalorder %s523, 1
        %s529 = scalar_select %p528, %s523, 1
        %s530 = smul.addr %s527, 2
        %s531 = sadd.s32 %s529, %s530
        %s532 = smul.addr %s525, 16
        %s533 = sadd.s32 %s531, %s532
        %s534 = smul.addr %s533, 8
        %s535 = scalar_lea.vmem %s2, %s534
      $region40: #{geometric_correlation_map.1} parent=35 // pred_fallthru
        _
    $region36: #{geometric_correlation_map.1} parent=5 // pred_fallthru
      _
  $region6: #{geometric_correlation_map.1} parent=0 // loop_footer
    %s12 = sadd.s32 1, %s8
  $region7: #{geometric_correlation_map.1} parent=0 // loop_footer_branch
    %7 = sbr.rel target = $region3
  $region8: #{geometric_correlation_map.1} parent=0 // loop_exit
    _

</llo_original>
